<compile_context>
chip_gen: v7x
topology: tpu7x:2x2x1
jax: 0.10.0
libtpu: 0.0.40
codegen_flags: <defaults>
</compile_context>

<pallas_src>
import math

import jax
import jax.numpy as jnp
from jax.experimental import pallas as pl
from jax.experimental.pallas import tpu as pltpu


HIDDEN = 128         # shared trunk width
HEAD_HIDDEN = 64     # per-head hidden width (actor+critic fused -> 128)
OUT_LANES = 128      # lane-dense padded output width: [logits | value | 0-pad]
MAX_BLOCK_B = 2048   # max batch tile (amortizes per-grid-step overhead)
MIN_SPLIT_B = 512    # above this, force >=2 grid steps so v7x's 2 TCs both work


def _round_up(x, m):
    return (x + m - 1) // m * m


def a3c_forward_kernel(x_ref, w1_ref, wstack_ref, b_ref, out_ref):
    """One batch tile of the fused A3C forward.

    x_ref:      (Bt, state_dim)   f32
    w1_ref:     (state_dim, 128)  bf16  shared layer 1 (transposed vs torch)
    wstack_ref: (3, 128, 128)     bf16  [w2, wa1|wc1, blockdiag(wa2, wc2) pad]
    b_ref:      (4, 128)          f32   [b1, b2, ba1|bc1, ba2|bc2|pad]
    out_ref:    (Bt, 128)         f32/bf16  [logits | value | zero-pad]
    """
    bf16 = jnp.bfloat16
    b = b_ref[...]                       # f32 (4, 128)

    # shared trunk: bf16 MXU operands, f32 accumulation, f32 bias/ReLU
    h = jnp.dot(x_ref[...].astype(bf16), w1_ref[...],
                preferred_element_type=jnp.float32) + b[0]
    h = jnp.maximum(h, 0.0)
    h = jnp.dot(h.astype(bf16), wstack_ref[0],
                preferred_element_type=jnp.float32) + b[1]
    h = jnp.maximum(h, 0.0)

    # fused actor+critic hidden: cols [0:64] actor, [64:128] critic
    g = jnp.dot(h.astype(bf16), wstack_ref[1],
                preferred_element_type=jnp.float32) + b[2]
    g = jnp.maximum(g, 0.0)

    # fused second head matmul (block-diagonal, zero-padded): lane-dense output
    out = jnp.dot(g.astype(bf16), wstack_ref[2],
                  preferred_element_type=jnp.float32) + b[3]
    out_ref[...] = out.astype(out_ref.dtype)


def pack_params(params):
    """Pack per-layer params into fused, lane-dense slabs. Call ONCE (not per-step)."""
    action_dim = params["wa2"].shape[1]
    assert action_dim + 1 <= OUT_LANES

    # bf16 weights (MXU-native on all generations); biases stay f32.
    w1 = params["w1"].astype(jnp.bfloat16)                             # (S, 128)

    # Fused head-1 weights: h @ [wa1 | wc1] -> (B, 128)
    w_h1 = jnp.concatenate([params["wa1"], params["wc1"]], axis=1)     # (128, 128)
    b_h1 = jnp.concatenate([params["ba1"], params["bc1"]], axis=1)     # (1, 128)

    # Fused head-2 weights: block-diagonal, zero-padded to 128 output lanes
    w_h2 = jnp.zeros((HIDDEN, OUT_LANES), jnp.float32)
    w_h2 = w_h2.at[:HEAD_HIDDEN, :action_dim].set(params["wa2"])
    w_h2 = w_h2.at[HEAD_HIDDEN:, action_dim:action_dim + 1].set(params["wc2"])
    b_h2 = jnp.zeros((1, OUT_LANES), jnp.float32)
    b_h2 = b_h2.at[:, :action_dim].set(params["ba2"])
    b_h2 = b_h2.at[:, action_dim:action_dim + 1].set(params["bc2"])

    w_stack = jnp.stack([params["w2"], w_h1, w_h2], axis=0).astype(jnp.bfloat16)
    b_all = jnp.concatenate(
        [params["b1"], params["b2"], b_h1, b_h2], axis=0).astype(jnp.float32)

    return dict(w1=w1, w_stack=w_stack, b_all=b_all)


def _a3c_forward_xla(x, packed):
    """Plain-XLA dot chain for tiny batches (no pallas_call overhead)."""
    bf16 = jnp.bfloat16
    b = packed["b_all"]
    h = jnp.maximum(jnp.dot(x.astype(bf16), packed["w1"],
                            preferred_element_type=jnp.float32) + b[0], 0.0)
    h = jnp.maximum(jnp.dot(h.astype(bf16), packed["w_stack"][0],
                            preferred_element_type=jnp.float32) + b[1], 0.0)
    g = jnp.maximum(jnp.dot(h.astype(bf16), packed["w_stack"][1],
                            preferred_element_type=jnp.float32) + b[2], 0.0)
    return jnp.dot(g.astype(bf16), packed["w_stack"][2],
                   preferred_element_type=jnp.float32) + b[3]


def a3c_forward(x, packed, *, action_dim, out_dtype=jnp.float32,
                min_pallas_batch=0):
    """x: (B, state_dim) f32. Returns (logits (B, action_dim), value (B, 1))."""
    batch, state_dim = x.shape
    out_dtype = jnp.dtype(out_dtype)

    if batch <= min_pallas_batch:
        out = _a3c_forward_xla(x, packed).astype(out_dtype)
        return out[:, :action_dim], out[:, action_dim:action_dim + 1]

    # --- balanced batch tiling -------------------------------------------
    # bf16 output needs (16, 128) sublane tiling; f32 needs (8, 128).
    row_tile = 16 if out_dtype == jnp.dtype(jnp.bfloat16) else 8
    n_tiles = pl.cdiv(batch, MAX_BLOCK_B)
    if batch > MIN_SPLIT_B:
        n_tiles = max(n_tiles, 2)          # v7x: keep both TensorCores busy
    block_b = _round_up(pl.cdiv(batch, n_tiles), row_tile)
    grid_b = pl.cdiv(batch, block_b)       # ragged last block handled by Pallas

    # --- advisory cost estimate for XLA's scheduler ------------------------
    flops = 2 * batch * (state_dim * HIDDEN + 3 * HIDDEN * HIDDEN)
    bytes_accessed = (
        batch * state_dim * 4                      # x (f32)
        + batch * OUT_LANES * out_dtype.itemsize   # output slab
        + state_dim * HIDDEN * 2                   # w1 (bf16)
        + 3 * HIDDEN * HIDDEN * 2                  # w_stack (bf16)
        + 4 * OUT_LANES * 4)                       # biases (f32)
    cost = pl.CostEstimate(flops=int(flops), transcendentals=0,
                           bytes_accessed=int(bytes_accessed))

    out = pl.pallas_call(
        a3c_forward_kernel,
        out_shape=jax.ShapeDtypeStruct((batch, OUT_LANES), out_dtype),
        grid=(grid_b,),
        in_specs=[
            pl.BlockSpec((block_b, state_dim), lambda i: (i, 0)),
            # Constant-index weight/bias blocks: resident across the grid.
            pl.BlockSpec((state_dim, HIDDEN), lambda i: (0, 0)),
            pl.BlockSpec((3, HIDDEN, HIDDEN), lambda i: (0, 0, 0)),
            pl.BlockSpec((4, OUT_LANES), lambda i: (0, 0)),
        ],
        out_specs=pl.BlockSpec((block_b, OUT_LANES), lambda i: (i, 0)),
        compiler_params=pltpu.CompilerParams(
            dimension_semantics=("parallel",)),
        cost_estimate=cost,
    )(x, packed["w1"], packed["w_stack"], packed["b_all"])

    logits = out[:, :action_dim]
    value = out[:, action_dim:action_dim + 1]
    return logits, value


def init_params(key, state_dim, action_dim):
    """Deterministic init mimicking torch.nn.Linear default U(-1/sqrt(fan_in), +)."""
    def linear(key, fan_in, fan_out):
        kw, kb = jax.random.split(key)
        bound = 1.0 / math.sqrt(fan_in)
        w = jax.random.uniform(kw, (fan_in, fan_out), jnp.float32, -bound, bound)
        b = jax.random.uniform(kb, (1, fan_out), jnp.float32, -bound, bound)
        return w, b

    keys = jax.random.split(key, 6)
    w1, b1 = linear(keys[0], state_dim, HIDDEN)
    w2, b2 = linear(keys[1], HIDDEN, HIDDEN)
    wa1, ba1 = linear(keys[2], HIDDEN, HEAD_HIDDEN)
    wa2, ba2 = linear(keys[3], HEAD_HIDDEN, action_dim)
    wc1, bc1 = linear(keys[4], HIDDEN, HEAD_HIDDEN)
    wc2, bc2 = linear(keys[5], HEAD_HIDDEN, 1)
    return dict(
        w1=w1, b1=b1, w2=w2, b2=b2,
        wa1=wa1, ba1=ba1, wa2=wa2, ba2=ba2,
        wc1=wc1, bc1=bc1, wc2=wc2, bc2=bc2,
    )


def a3c_forward_ref(x, p):
    """Pure-JAX f32 reference (matches the PyTorch module semantics)."""
    h = jnp.maximum(x @ p["w1"] + p["b1"], 0.0)
    h = jnp.maximum(h @ p["w2"] + p["b2"], 0.0)
    a = jnp.maximum(h @ p["wa1"] + p["ba1"], 0.0)
    logits = a @ p["wa2"] + p["ba2"]
    c = jnp.maximum(h @ p["wc1"] + p["bc1"], 0.0)
    value = c @ p["wc2"] + p["bc2"]
    return logits, value


if __name__ == "__main__":
    key = jax.random.PRNGKey(0)
    k_param, k_x = jax.random.split(key)

    state_dim, action_dim = 16, 4
    params = init_params(k_param, state_dim, action_dim)
    packed = pack_params(params)

    fwd = jax.jit(a3c_forward,
                  static_argnames=("action_dim", "out_dtype", "min_pallas_batch"))

    # bf16-matmul kernel vs f32 reference -> loosened tolerance.
    ATOL = RTOL = 3e-2

    # Small batch: single tile, exercises the base path.
    x_small = jax.random.normal(k_x, (8, state_dim), jnp.float32)
    logits, value = fwd(x_small, packed, action_dim=action_dim)
    jax.block_until_ready((logits, value))
    ref_logits, ref_value = a3c_forward_ref(x_small, params)
    assert logits.shape == (8, action_dim)
    assert value.shape == (8, 1)
    assert jnp.allclose(logits, ref_logits, atol=ATOL, rtol=RTOL)
    assert jnp.allclose(value, ref_value, atol=ATOL, rtol=RTOL)

    # Larger ragged batch: 2 balanced tiles (megacore split) + masked last block,
    # no wrapper-side padding of x.
    x_big = jax.random.normal(jax.random.PRNGKey(1), (1000, state_dim), jnp.float32)
    logits_b, value_b = fwd(x_big, packed, action_dim=action_dim)
    jax.block_until_ready((logits_b, value_b))
    ref_lb, ref_vb = a3c_forward_ref(x_big, params)
    assert logits_b.shape == (1000, action_dim)
    assert value_b.shape == (1000, 1)
    assert jnp.allclose(logits_b, ref_lb, atol=ATOL, rtol=RTOL)
    assert jnp.allclose(value_b, ref_vb, atol=ATOL, rtol=RTOL)

    print("KERNEL_OK")
</pallas_src>

<mosaic_0001>
module attributes {stable_mosaic.version = 11 : i64} {
  func.func @a3c_forward_kernel(%arg0: i32, %arg1: memref<8x16xf32, #tpu.memory_space<vmem>>, %arg2: memref<16x128xbf16, #tpu.memory_space<vmem>>, %arg3: memref<3x128x128xbf16, #tpu.memory_space<vmem>>, %arg4: memref<4x128xf32, #tpu.memory_space<vmem>>, %arg5: memref<8x128xf32, #tpu.memory_space<vmem>>) attributes {dimension_semantics = [#tpu.dimension_semantics<parallel>], iteration_bounds = array<i64: 1>, scalar_prefetch = 0 : i64, scratch_operands = 0 : i64, tpu.core_type = #tpu.core_type<tc>, window_params = [{transform_indices = @transform_0, window_bounds = array<i64: 8, 16>}, {pipeline_mode = #tpu.pipeline_mode<synchronous>, transform_indices = @transform_1, window_bounds = array<i64: 16, 128>}, {pipeline_mode = #tpu.pipeline_mode<synchronous>, transform_indices = @transform_2, window_bounds = array<i64: 3, 128, 128>}, {pipeline_mode = #tpu.pipeline_mode<synchronous>, transform_indices = @transform_3, window_bounds = array<i64: 4, 128>}, {transform_indices = @transform_4, window_bounds = array<i64: 8, 128>}]} {
    %c0 = arith.constant 0 : index
    %c0_0 = arith.constant 0 : index
    %0 = vector.load %arg4[%c0, %c0_0] : memref<4x128xf32, #tpu.memory_space<vmem>>, vector<4x128xf32>
    %c0_1 = arith.constant 0 : index
    %c0_2 = arith.constant 0 : index
    %1 = vector.load %arg1[%c0_1, %c0_2] : memref<8x16xf32, #tpu.memory_space<vmem>>, vector<8x16xf32>
    %2 = arith.truncf %1 : vector<8x16xf32> to vector<8x16xbf16>
    %c0_3 = arith.constant 0 : index
    %c0_4 = arith.constant 0 : index
    %3 = vector.load %arg2[%c0_3, %c0_4] : memref<16x128xbf16, #tpu.memory_space<vmem>>, vector<16x128xbf16>
    %cst = arith.constant dense<0.000000e+00> : vector<8x128xf32>
    %4 = tpu.matmul %2, %3, %cst {dimension_numbers = #tpu.dot_dimension_numbers<[1], [0], [0], [1], [0, 0, 1, 1], [], []>} : vector<8x16xbf16>, vector<16x128xbf16>, vector<8x128xf32> -> vector<8x128xf32>
    %5 = vector.extract_strided_slice %0 {offsets = [0, 0], sizes = [1, 128], strides = [1, 1]} : vector<4x128xf32> to vector<1x128xf32>
    %6 = vector.shape_cast %5 : vector<1x128xf32> to vector<128xf32>
    %7 = vector.shape_cast %6 : vector<128xf32> to vector<1x128xf32>
    %8 = vector.broadcast %7 : vector<1x128xf32> to vector<8x128xf32>
    %9 = arith.addf %4, %8 : vector<8x128xf32>
    %cst_5 = arith.constant 0.000000e+00 : f32
    %10 = vector.broadcast %cst_5 : f32 to vector<8x128xf32>
    %11 = arith.maximumf %9, %10 : vector<8x128xf32>
    %12 = arith.truncf %11 : vector<8x128xf32> to vector<8x128xbf16>
    %c0_6 = arith.constant 0 : index
    %c0_7 = arith.constant 0 : index
    %c0_8 = arith.constant 0 : index
    %13 = vector.load %arg3[%c0_6, %c0_7, %c0_8] : memref<3x128x128xbf16, #tpu.memory_space<vmem>>, vector<1x128x128xbf16>
    %14 = vector.shape_cast %13 : vector<1x128x128xbf16> to vector<128x128xbf16>
    %cst_9 = arith.constant dense<0.000000e+00> : vector<8x128xf32>
    %15 = tpu.matmul %12, %14, %cst_9 {dimension_numbers = #tpu.dot_dimension_numbers<[1], [0], [0], [1], [0, 0, 1, 1], [], []>} : vector<8x128xbf16>, vector<128x128xbf16>, vector<8x128xf32> -> vector<8x128xf32>
    %16 = vector.extract_strided_slice %0 {offsets = [1, 0], sizes = [1, 128], strides = [1, 1]} : vector<4x128xf32> to vector<1x128xf32>
    %17 = vector.shape_cast %16 : vector<1x128xf32> to vector<128xf32>
    %18 = vector.shape_cast %17 : vector<128xf32> to vector<1x128xf32>
    %19 = vector.broadcast %18 : vector<1x128xf32> to vector<8x128xf32>
    %20 = arith.addf %15, %19 : vector<8x128xf32>
    %cst_10 = arith.constant 0.000000e+00 : f32
    %21 = vector.broadcast %cst_10 : f32 to vector<8x128xf32>
    %22 = arith.maximumf %20, %21 : vector<8x128xf32>
    %23 = arith.truncf %22 : vector<8x128xf32> to vector<8x128xbf16>
    %c1 = arith.constant 1 : index
    %c0_11 = arith.constant 0 : index
    %c0_12 = arith.constant 0 : index
    %24 = vector.load %arg3[%c1, %c0_11, %c0_12] : memref<3x128x128xbf16, #tpu.memory_space<vmem>>, vector<1x128x128xbf16>
    %25 = vector.shape_cast %24 : vector<1x128x128xbf16> to vector<128x128xbf16>
    %cst_13 = arith.constant dense<0.000000e+00> : vector<8x128xf32>
    %26 = tpu.matmul %23, %25, %cst_13 {dimension_numbers = #tpu.dot_dimension_numbers<[1], [0], [0], [1], [0, 0, 1, 1], [], []>} : vector<8x128xbf16>, vector<128x128xbf16>, vector<8x128xf32> -> vector<8x128xf32>
    %27 = vector.extract_strided_slice %0 {offsets = [2, 0], sizes = [1, 128], strides = [1, 1]} : vector<4x128xf32> to vector<1x128xf32>
    %28 = vector.shape_cast %27 : vector<1x128xf32> to vector<128xf32>
    %29 = vector.shape_cast %28 : vector<128xf32> to vector<1x128xf32>
    %30 = vector.broadcast %29 : vector<1x128xf32> to vector<8x128xf32>
    %31 = arith.addf %26, %30 : vector<8x128xf32>
    %cst_14 = arith.constant 0.000000e+00 : f32
    %32 = vector.broadcast %cst_14 : f32 to vector<8x128xf32>
    %33 = arith.maximumf %31, %32 : vector<8x128xf32>
    %34 = arith.truncf %33 : vector<8x128xf32> to vector<8x128xbf16>
    %c2 = arith.constant 2 : index
    %c0_15 = arith.constant 0 : index
    %c0_16 = arith.constant 0 : index
    %35 = vector.load %arg3[%c2, %c0_15, %c0_16] : memref<3x128x128xbf16, #tpu.memory_space<vmem>>, vector<1x128x128xbf16>
    %36 = vector.shape_cast %35 : vector<1x128x128xbf16> to vector<128x128xbf16>
    %cst_17 = arith.constant dense<0.000000e+00> : vector<8x128xf32>
    %37 = tpu.matmul %34, %36, %cst_17 {dimension_numbers = #tpu.dot_dimension_numbers<[1], [0], [0], [1], [0, 0, 1, 1], [], []>} : vector<8x128xbf16>, vector<128x128xbf16>, vector<8x128xf32> -> vector<8x128xf32>
    %38 = vector.extract_strided_slice %0 {offsets = [3, 0], sizes = [1, 128], strides = [1, 1]} : vector<4x128xf32> to vector<1x128xf32>
    %39 = vector.shape_cast %38 : vector<1x128xf32> to vector<128xf32>
    %40 = vector.shape_cast %39 : vector<128xf32> to vector<1x128xf32>
    %41 = vector.broadcast %40 : vector<1x128xf32> to vector<8x128xf32>
    %42 = arith.addf %37, %41 : vector<8x128xf32>
    %c0_18 = arith.constant 0 : index
    %c0_19 = arith.constant 0 : index
    %43 = vector.load %arg5[%c0_18, %c0_19] : memref<8x128xf32, #tpu.memory_space<vmem>>, vector<8x128xf32>
    tpu.vector_store %arg5[%c0_18, %c0_19], %42 {strides = array<i32>} : memref<8x128xf32, #tpu.memory_space<vmem>>, vector<8x128xf32>,
    return
  }
  func.func @transform_0(%arg0: i32) -> (i32, i32) {
    %c0_i32 = arith.constant 0 : i32
    %c0_i32_0 = arith.constant 0 : i32
    return %arg0, %c0_i32 : i32, i32
  }
  func.func @transform_1(%arg0: i32) -> (i32, i32) {
    %c0_i32 = arith.constant 0 : i32
    %c0_i32_0 = arith.constant 0 : i32
    %c0_i32_1 = arith.constant 0 : i32
    return %c0_i32, %c0_i32_0 : i32, i32
  }
  func.func @transform_2(%arg0: i32) -> (i32, i32, i32) {
    %c0_i32 = arith.constant 0 : i32
    %c0_i32_0 = arith.constant 0 : i32
    %c0_i32_1 = arith.constant 0 : i32
    %c0_i32_2 = arith.constant 0 : i32
    return %c0_i32, %c0_i32_0, %c0_i32_1 : i32, i32, i32
  }
  func.func @transform_3(%arg0: i32) -> (i32, i32) {
    %c0_i32 = arith.constant 0 : i32
    %c0_i32_0 = arith.constant 0 : i32
    %c0_i32_1 = arith.constant 0 : i32
    return %c0_i32, %c0_i32_0 : i32, i32
  }
  func.func @transform_4(%arg0: i32) -> (i32, i32) {
    %c0_i32 = arith.constant 0 : i32
    %c0_i32_0 = arith.constant 0 : i32
    return %arg0, %c0_i32 : i32, i32
  }
}

</mosaic_0001>

<llo_original>
// kernel: a3c_forward.1
$region0: #{a3c_forward.1}
  #allocation0 [shape = 'u32[]', space=smem, size = 0x4, offset = 0x4, fixed_abs, tag = 'smem constant byte address 0x4 - core index']
  #allocation1 [shape = 'u32[144,128]{1,0:T(1,128)}', space=vmem, size = 0x12000, scoped, tag = 'internal scratch']
  %s0 = inlined_call_operand.hbm [shape: f32[8,16], index: 0, kind: input, shape index: {}]
  %s1 = inlined_call_operand.hbm [shape: bf16[16,128], index: 1, kind: input, shape index: {}]
  %s2 = inlined_call_operand.hbm [shape: bf16[3,128,128], index: 2, kind: input, shape index: {}]
  %s3 = inlined_call_operand.vmem [shape: f32[4,128], index: 3, kind: input, shape index: {}]
  %s4 = inlined_call_operand.vmem [shape: f32[8,128], index: 4, kind: output, shape index: {}]
  %s5 = sld [smem:[#allocation0]]
  $region38: #{a3c_forward.1} parent=0
    _
  %s7 = ssub.s32 1, %s5
  %s8 = scalar_select 0, %s7, %s5
  $region1: #{a3c_forward.1} parent=0
    #allocation2 [shape = 'u8[4096]{0}', space=vmem, size = 0x1000, scoped, tag = 'input window, operand 0, single buffered']
    #allocation3 [shape = 's32[1]{0}', space=sflag, size = 0x4, scoped, tag = 'scoped memory for a3c_forward.1']
    #allocation4 [shape = 'u8[4096]{0}', space=vmem, size = 0x1000, scoped, tag = 'input window, operand 1, single buffered']
    #allocation5 [shape = 's32[1]{0}', space=sflag, size = 0x4, scoped, tag = 'scoped memory for a3c_forward.1']
    #allocation6 [shape = 'u8[98304]{0}', space=vmem, size = 0x18000, scoped, tag = 'input window, operand 2, single buffered']
    %9 = vsyncpa [#allocation3], 0
    %10 = vsyncpa [#allocation5], 0
    // Predicated region
    $region2: #{a3c_forward.1} parent=1 // pred_check
      _
    $region3: #{a3c_forward.1} parent=1 // pred_check_branch
      %12 = sbr.rel (0) target = $region5
    $region4: #{a3c_forward.1} parent=1 // pred_region
      %s14 = ssub.s32 128, 128
      %15 = vsyncadd [#allocation3], %s14
      %s17 = sshll.u32 [#allocation2], 4
      %s18 = int_to_ptr.vmem [resolvable:$true] %s17
      %20 = dma.hbm_to_vmem [thread:$0]  %s0, 128, %s18, [#allocation3]
    $region5: #{a3c_forward.1} parent=1 // pred_fallthru
      _
    // Predicated region
    $region6: #{a3c_forward.1} parent=1 // pred_check
      _
    $region7: #{a3c_forward.1} parent=1 // pred_check_branch
      %22 = sbr.rel (0) target = $region9
    $region8: #{a3c_forward.1} parent=1 // pred_region
      %s24 = ssub.s32 128, 128
      %25 = vsyncadd [#allocation5], %s24
      %s26 = sshll.u32 [#allocation4], 4
      %s27 = int_to_ptr.vmem [resolvable:$true] %s26
      %32 = dma.hbm_to_vmem [thread:$0]  %s1, 128, %s27, [#allocation5], 64, 64, 4
    $region9: #{a3c_forward.1} parent=1 // pred_fallthru
      _
    // Predicated region
    $region10: #{a3c_forward.1} parent=1 // pred_check
      _
    $region11: #{a3c_forward.1} parent=1 // pred_check_branch
      %34 = sbr.rel (0) target = $region13
    $region12: #{a3c_forward.1} parent=1 // pred_region
      %s36 = ssub.s32 3072, 3072
      %37 = vsyncadd [#allocation5], %s36
      %s38 = sshll.u32 [#allocation6], 4
      %s39 = int_to_ptr.vmem [resolvable:$true] %s38
      %44 = dma.hbm_to_vmem [thread:$0]  %s2, 3072, %s39, [#allocation5], 64, 64, 4
    $region13: #{a3c_forward.1} parent=1 // pred_fallthru
      _
    // Predicated region
    $region14: #{a3c_forward.1} parent=1 // pred_check
      _
    $region15: #{a3c_forward.1} parent=1 // pred_check_branch
      %46 = sbr.rel (0) target = $region17
    $region16: #{a3c_forward.1} parent=1 // pred_region
      _
    $region17: #{a3c_forward.1} parent=1 // pred_fallthru
      _
    // Predicated region
    $region18: #{a3c_forward.1} parent=1 // pred_check
      _
    $region19: #{a3c_forward.1} parent=1 // pred_check_branch
      %48 = sbr.rel (0) target = $region21
    $region20: #{a3c_forward.1} parent=1 // pred_region
      %49 = dma.done [#allocation3], 128
    $region21: #{a3c_forward.1} parent=1 // pred_fallthru
      _
    // Predicated region
    $region22: #{a3c_forward.1} parent=1 // pred_check
      _
    $region23: #{a3c_forward.1} parent=1 // pred_check_branch
      %51 = sbr.rel (0) target = $region25
    $region24: #{a3c_forward.1} parent=1 // pred_region
      %52 = dma.done [#allocation5], 128
    $region25: #{a3c_forward.1} parent=1 // pred_fallthru
      _
    // Predicated region
    $region26: #{a3c_forward.1} parent=1 // pred_check
      _
    $region27: #{a3c_forward.1} parent=1 // pred_check_branch
      %54 = sbr.rel (0) target = $region29
    $region28: #{a3c_forward.1} parent=1 // pred_region
      %55 = dma.done [#allocation5], 3072
    $region29: #{a3c_forward.1} parent=1 // pred_fallthru
      _
    %v57 = vld [vmem:[%s3] sm:$0xf]
    %v58 = vld [vmem:[#allocation2] sm:$0xff]
    %v59 = vpack.c.bf16 %v58, %v58
    %v60 = vld [vmem:[#allocation4] sm:$0xf]
    %v61 = vld [vmem:[#allocation4 + $0x4] sm:$0xf]
    %v62 = vlaneseq
    %v63 = vshrl.u32 %v62, 7
    %v64 = vsub.s32 0, %v63
    %v65 = vrot.slane %v57, %v64
    %v68 = vunpack.c.l.b16 %v60
    %v69 = vunpack.c.l.b16 %v61
    %v70 = vpack.c.b16 %v69, %v68
    %vm72 = vcmask 130048
    %v74 = vsel %vm72, %v59, 0
    %76 = vmatprep.subr.bf16.mxu0 0
    %77 = vmatpush1.bf16.msra.mxu0 %v70
    %78 = vmatprep.subr.bf16.mxu0 0
    %79 = vmatpush1.bf16.msra.mxu0 0
    %80 = vmatprep.subr.bf16.mxu0 0
    %81 = vmatpush1.bf16.msra.mxu0 0
    %82 = vmatprep.subr.bf16.mxu0 0
    %83 = vmatpush1.bf16.msra.mxu0 0
    %84 = vmatprep.subr.bf16.mxu0 0
    %85 = vmatpush1.bf16.msra.mxu0 0
    %86 = vmatprep.subr.bf16.mxu0 0
    %87 = vmatpush1.bf16.msra.mxu0 0
    %88 = vmatprep.subr.bf16.mxu0 0
    %89 = vmatpush1.bf16.msra.mxu0 0
    %90 = vmatprep.subr.bf16.mxu0 0
    %91 = vmatpush1.bf16.msra.mxu0 0
    %92 = vmatprep.subr.bf16.mxu0 0
    %93 = vmatpush1.bf16.msra.mxu0 0
    %94 = vmatprep.subr.bf16.mxu0 0
    %95 = vmatpush1.bf16.msra.mxu0 0
    %96 = vmatprep.subr.bf16.mxu0 0
    %97 = vmatpush1.bf16.msra.mxu0 0
    %98 = vmatprep.subr.bf16.mxu0 0
    %99 = vmatpush1.bf16.msra.mxu0 0
    %100 = vmatprep.subr.bf16.mxu0 0
    %101 = vmatpush1.bf16.msra.mxu0 0
    %102 = vmatprep.subr.bf16.mxu0 0
    %103 = vmatpush1.bf16.msra.mxu0 0
    %104 = vmatprep.subr.bf16.mxu0 0
    %105 = vmatpush1.bf16.msra.mxu0 0
    %106 = vmatprep.subr.bf16.mxu0 0
    %107 = vmatpush1.bf16.msra.mxu0 0
    %108 = vmatprep.mubr.bf16.mxu0 0
    %109 = vmatmul.mubr.bf16.gmra.mrb[0].mxu0 %v74
    %v110 = vpop.f32.mrb[0].mxu0
    %v111 = vadd.f32 %v65, %v110
    %v112 = vpop.f32.mrb[0].mxu0
    %v113 = vpop.f32.mrb[0].mxu0
    %v114 = vpop.f32.mrb[0].mxu0
    %115 = vdwg.mxu0
    %v116 = vmax.f32 %v111, 0.0
    %v117 = vpack.c.bf16 %v116, %v116
    %v118 = vld [vmem:[#allocation6] sm:$0xf]
    %v119 = vld [vmem:[#allocation6 + $0x4] sm:$0xf]
    %v120 = vld [vmem:[#allocation6 + $0x8] sm:$0xf]
    %v121 = vld [vmem:[#allocation6 + $0xc] sm:$0xf]
    %v122 = vld [vmem:[#allocation6 + $0x10] sm:$0xf]
    %v123 = vld [vmem:[#allocation6 + $0x14] sm:$0xf]
    %v124 = vld [vmem:[#allocation6 + $0x18] sm:$0xf]
    %v125 = vld [vmem:[#allocation6 + $0x1c] sm:$0xf]
    %v126 = vld [vmem:[#allocation6 + $0x20] sm:$0xf]
    %v127 = vld [vmem:[#allocation6 + $0x24] sm:$0xf]
    %v128 = vld [vmem:[#allocation6 + $0x28] sm:$0xf]
    %v129 = vld [vmem:[#allocation6 + $0x2c] sm:$0xf]
    %v130 = vld [vmem:[#allocation6 + $0x30] sm:$0xf]
    %v131 = vld [vmem:[#allocation6 + $0x34] sm:$0xf]
    %v132 = vld [vmem:[#allocation6 + $0x38] sm:$0xf]
    %v133 = vld [vmem:[#allocation6 + $0x3c] sm:$0xf]
    %v134 = vlaneseq
    %v135 = vshrl.u32 %v134, 7
    %v136 = vsub.s32 1, %v135
    %v137 = vrot.slane %v57, %v136
    %v154 = vunpack.c.l.b16 %v118
    %v155 = vunpack.c.l.b16 %v119
    %v156 = vunpack.c.l.b16 %v120
    %v157 = vunpack.c.l.b16 %v121
    %v158 = vunpack.c.l.b16 %v122
    %v159 = vunpack.c.l.b16 %v123
    %v160 = vunpack.c.l.b16 %v124
    %v161 = vunpack.c.l.b16 %v125
    %v162 = vunpack.c.l.b16 %v126
    %v163 = vunpack.c.l.b16 %v127
    %v164 = vunpack.c.l.b16 %v128
    %v165 = vunpack.c.l.b16 %v129
    %v166 = vunpack.c.l.b16 %v130
    %v167 = vunpack.c.l.b16 %v131
    %v168 = vunpack.c.l.b16 %v132
    %v169 = vunpack.c.l.b16 %v133
    %v170 = vpack.c.b16 %v155, %v154
    %v171 = vpack.c.b16 %v157, %v156
    %v172 = vpack.c.b16 %v159, %v158
    %v173 = vpack.c.b16 %v161, %v160
    %v174 = vpack.c.b16 %v163, %v162
    %v175 = vpack.c.b16 %v165, %v164
    %v176 = vpack.c.b16 %v167, %v166
    %v177 = vpack.c.b16 %v169, %v168
    %186 = vmatprep.subr.bf16.mxu0 0
    %187 = vmatpush1.bf16.msra.mxu0 %v170
    %188 = vmatprep.subr.bf16.mxu0 0
    %189 = vmatpush1.bf16.msra.mxu0 %v171
    %190 = vmatprep.subr.bf16.mxu0 0
    %191 = vmatpush1.bf16.msra.mxu0 %v172
    %192 = vmatprep.subr.bf16.mxu0 0
    %193 = vmatpush1.bf16.msra.mxu0 %v173
    %194 = vmatprep.subr.bf16.mxu0 0
    %195 = vmatpush1.bf16.msra.mxu0 %v174
    %196 = vmatprep.subr.bf16.mxu0 0
    %197 = vmatpush1.bf16.msra.mxu0 %v175
    %198 = vmatprep.subr.bf16.mxu0 0
    %199 = vmatpush1.bf16.msra.mxu0 %v176
    %200 = vmatprep.subr.bf16.mxu0 0
    %201 = vmatpush1.bf16.msra.mxu0 %v177
    %202 = vmatprep.subr.bf16.mxu0 0
    %203 = vmatpush1.bf16.msra.mxu0 0
    %204 = vmatprep.subr.bf16.mxu0 0
    %205 = vmatpush1.bf16.msra.mxu0 0
    %206 = vmatprep.subr.bf16.mxu0 0
    %207 = vmatpush1.bf16.msra.mxu0 0
    %208 = vmatprep.subr.bf16.mxu0 0
    %209 = vmatpush1.bf16.msra.mxu0 0
    %210 = vmatprep.subr.bf16.mxu0 0
    %211 = vmatpush1.bf16.msra.mxu0 0
    %212 = vmatprep.subr.bf16.mxu0 0
    %213 = vmatpush1.bf16.msra.mxu0 0
    %214 = vmatprep.subr.bf16.mxu0 0
    %215 = vmatpush1.bf16.msra.mxu0 0
    %216 = vmatprep.subr.bf16.mxu0 0
    %217 = vmatpush1.bf16.msra.mxu0 0
    %218 = vmatprep.mubr.bf16.mxu0 0
    %219 = vmatmul.mubr.bf16.gmra.mrb[0].mxu0 %v117
    %v220 = vpop.f32.mrb[0].mxu0
    %v221 = vadd.f32 %v137, %v220
    %v222 = vpop.f32.mrb[0].mxu0
    %v223 = vpop.f32.mrb[0].mxu0
    %v224 = vpop.f32.mrb[0].mxu0
    %225 = vdwg.mxu0
    %v226 = vmax.f32 %v221, 0.0
    %v227 = vpack.c.bf16 %v226, %v226
    %s228 = scalar_lea.vmem [#allocation6], 64
    %v229 = vld [vmem:[%s228] sm:$0xf]
    %v230 = vld [vmem:[%s228 + $0x4] sm:$0xf]
    %v231 = vld [vmem:[%s228 + $0x8] sm:$0xf]
    %v232 = vld [vmem:[%s228 + $0xc] sm:$0xf]
    %v233 = vld [vmem:[%s228 + $0x10] sm:$0xf]
    %v234 = vld [vmem:[%s228 + $0x14] sm:$0xf]
    %v235 = vld [vmem:[%s228 + $0x18] sm:$0xf]
    %v236 = vld [vmem:[%s228 + $0x1c] sm:$0xf]
    %v237 = vld [vmem:[%s228 + $0x20] sm:$0xf]
    %v238 = vld [vmem:[%s228 + $0x24] sm:$0xf]
    %v239 = vld [vmem:[%s228 + $0x28] sm:$0xf]
    %v240 = vld [vmem:[%s228 + $0x2c] sm:$0xf]
    %v241 = vld [vmem:[%s228 + $0x30] sm:$0xf]
    %v242 = vld [vmem:[%s228 + $0x34] sm:$0xf]
    %v243 = vld [vmem:[%s228 + $0x38] sm:$0xf]
    %v244 = vld [vmem:[%s228 + $0x3c] sm:$0xf]
    %v245 = vlaneseq
    %v246 = vshrl.u32 %v245, 7
    %v247 = vsub.s32 2, %v246
    %v248 = vrot.slane %v57, %v247
    %v265 = vunpack.c.l.b16 %v229
    %v266 = vunpack.c.l.b16 %v230
    %v267 = vunpack.c.l.b16 %v231
    %v268 = vunpack.c.l.b16 %v232
    %v269 = vunpack.c.l.b16 %v233
    %v270 = vunpack.c.l.b16 %v234
    %v271 = vunpack.c.l.b16 %v235
    %v272 = vunpack.c.l.b16 %v236
    %v273 = vunpack.c.l.b16 %v237
    %v274 = vunpack.c.l.b16 %v238
    %v275 = vunpack.c.l.b16 %v239
    %v276 = vunpack.c.l.b16 %v240
    %v277 = vunpack.c.l.b16 %v241
    %v278 = vunpack.c.l.b16 %v242
    %v279 = vunpack.c.l.b16 %v243
    %v280 = vunpack.c.l.b16 %v244
    %v281 = vpack.c.b16 %v266, %v265
    %v282 = vpack.c.b16 %v268, %v267
    %v283 = vpack.c.b16 %v270, %v269
    %v284 = vpack.c.b16 %v272, %v271
    %v285 = vpack.c.b16 %v274, %v273
    %v286 = vpack.c.b16 %v276, %v275
    %v287 = vpack.c.b16 %v278, %v277
    %v288 = vpack.c.b16 %v280, %v279
    %297 = vmatprep.subr.bf16.mxu0 0
    %298 = vmatpush1.bf16.msra.mxu0 %v281
    %299 = vmatprep.subr.bf16.mxu0 0
    %300 = vmatpush1.bf16.msra.mxu0 %v282
    %301 = vmatprep.subr.bf16.mxu0 0
    %302 = vmatpush1.bf16.msra.mxu0 %v283
    %303 = vmatprep.subr.bf16.mxu0 0
    %304 = vmatpush1.bf16.msra.mxu0 %v284
    %305 = vmatprep.subr.bf16.mxu0 0
    %306 = vmatpush1.bf16.msra.mxu0 %v285
    %307 = vmatprep.subr.bf16.mxu0 0
    %308 = vmatpush1.bf16.msra.mxu0 %v286
    %309 = vmatprep.subr.bf16.mxu0 0
    %310 = vmatpush1.bf16.msra.mxu0 %v287
    %311 = vmatprep.subr.bf16.mxu0 0
    %312 = vmatpush1.bf16.msra.mxu0 %v288
    %313 = vmatprep.subr.bf16.mxu0 0
    %314 = vmatpush1.bf16.msra.mxu0 0
    %315 = vmatprep.subr.bf16.mxu0 0
    %316 = vmatpush1.bf16.msra.mxu0 0
    %317 = vmatprep.subr.bf16.mxu0 0
    %318 = vmatpush1.bf16.msra.mxu0 0
    %319 = vmatprep.subr.bf16.mxu0 0
    %320 = vmatpush1.bf16.msra.mxu0 0
    %321 = vmatprep.subr.bf16.mxu0 0
    %322 = vmatpush1.bf16.msra.mxu0 0
    %323 = vmatprep.subr.bf16.mxu0 0
    %324 = vmatpush1.bf16.msra.mxu0 0
    %325 = vmatprep.subr.bf16.mxu0 0
    %326 = vmatpush1.bf16.msra.mxu0 0
    %327 = vmatprep.subr.bf16.mxu0 0
    %328 = vmatpush1.bf16.msra.mxu0 0
    %329 = vmatprep.mubr.bf16.mxu0 0
    %330 = vmatmul.mubr.bf16.gmra.mrb[0].mxu0 %v227
    %v331 = vpop.f32.mrb[0].mxu0
    %v332 = vadd.f32 %v248, %v331
    %v333 = vpop.f32.mrb[0].mxu0
    %v334 = vpop.f32.mrb[0].mxu0
    %v335 = vpop.f32.mrb[0].mxu0
    %336 = vdwg.mxu0
    %v337 = vmax.f32 %v332, 0.0
    %v338 = vpack.c.bf16 %v337, %v337
    %s339 = scalar_lea.vmem [#allocation6], 128
    %v340 = vld [vmem:[%s339] sm:$0xf]
    %v341 = vld [vmem:[%s339 + $0x4] sm:$0xf]
    %v342 = vld [vmem:[%s339 + $0x8] sm:$0xf]
    %v343 = vld [vmem:[%s339 + $0xc] sm:$0xf]
    %v344 = vld [vmem:[%s339 + $0x10] sm:$0xf]
    %v345 = vld [vmem:[%s339 + $0x14] sm:$0xf]
    %v346 = vld [vmem:[%s339 + $0x18] sm:$0xf]
    %v347 = vld [vmem:[%s339 + $0x1c] sm:$0xf]
    %v348 = vld [vmem:[%s339 + $0x20] sm:$0xf]
    %v349 = vld [vmem:[%s339 + $0x24] sm:$0xf]
    %v350 = vld [vmem:[%s339 + $0x28] sm:$0xf]
    %v351 = vld [vmem:[%s339 + $0x2c] sm:$0xf]
    %v352 = vld [vmem:[%s339 + $0x30] sm:$0xf]
    %v353 = vld [vmem:[%s339 + $0x34] sm:$0xf]
    %v354 = vld [vmem:[%s339 + $0x38] sm:$0xf]
    %v355 = vld [vmem:[%s339 + $0x3c] sm:$0xf]
    %v356 = vlaneseq
    %v357 = vshrl.u32 %v356, 7
    %v358 = vsub.s32 3, %v357
    %v359 = vrot.slane %v57, %v358
    %v376 = vunpack.c.l.b16 %v340
    %v377 = vunpack.c.l.b16 %v341
    %v378 = vunpack.c.l.b16 %v342
    %v379 = vunpack.c.l.b16 %v343
    %v380 = vunpack.c.l.b16 %v344
    %v381 = vunpack.c.l.b16 %v345
    %v382 = vunpack.c.l.b16 %v346
    %v383 = vunpack.c.l.b16 %v347
    %v384 = vunpack.c.l.b16 %v348
    %v385 = vunpack.c.l.b16 %v349
    %v386 = vunpack.c.l.b16 %v350
    %v387 = vunpack.c.l.b16 %v351
    %v388 = vunpack.c.l.b16 %v352
    %v389 = vunpack.c.l.b16 %v353
    %v390 = vunpack.c.l.b16 %v354
    %v391 = vunpack.c.l.b16 %v355
    %v392 = vpack.c.b16 %v377, %v376
    %v393 = vpack.c.b16 %v379, %v378
    %v394 = vpack.c.b16 %v381, %v380
    %v395 = vpack.c.b16 %v383, %v382
    %v396 = vpack.c.b16 %v385, %v384
    %v397 = vpack.c.b16 %v387, %v386
    %v398 = vpack.c.b16 %v389, %v388
    %v399 = vpack.c.b16 %v391, %v390
    %408 = vmatprep.subr.bf16.mxu0 0
    %409 = vmatpush1.bf16.msra.mxu0 %v392
    %410 = vmatprep.subr.bf16.mxu0 0
    %411 = vmatpush1.bf16.msra.mxu0 %v393
    %412 = vmatprep.subr.bf16.mxu0 0
    %413 = vmatpush1.bf16.msra.mxu0 %v394
    %414 = vmatprep.subr.bf16.mxu0 0
    %415 = vmatpush1.bf16.msra.mxu0 %v395
    %416 = vmatprep.subr.bf16.mxu0 0
    %417 = vmatpush1.bf16.msra.mxu0 %v396
    %418 = vmatprep.subr.bf16.mxu0 0
    %419 = vmatpush1.bf16.msra.mxu0 %v397
    %420 = vmatprep.subr.bf16.mxu0 0
    %421 = vmatpush1.bf16.msra.mxu0 %v398
    %422 = vmatprep.subr.bf16.mxu0 0
    %423 = vmatpush1.bf16.msra.mxu0 %v399
    %424 = vmatprep.subr.bf16.mxu0 0
    %425 = vmatpush1.bf16.msra.mxu0 0
    %426 = vmatprep.subr.bf16.mxu0 0
    %427 = vmatpush1.bf16.msra.mxu0 0
    %428 = vmatprep.subr.bf16.mxu0 0
    %429 = vmatpush1.bf16.msra.mxu0 0
    %430 = vmatprep.subr.bf16.mxu0 0
    %431 = vmatpush1.bf16.msra.mxu0 0
    %432 = vmatprep.subr.bf16.mxu0 0
    %433 = vmatpush1.bf16.msra.mxu0 0
    %434 = vmatprep.subr.bf16.mxu0 0
    %435 = vmatpush1.bf16.msra.mxu0 0
    %436 = vmatprep.subr.bf16.mxu0 0
    %437 = vmatpush1.bf16.msra.mxu0 0
    %438 = vmatprep.subr.bf16.mxu0 0
    %439 = vmatpush1.bf16.msra.mxu0 0
    %440 = vmatprep.mubr.bf16.mxu0 0
    %441 = vmatmul.mubr.bf16.gmra.mrb[0].mxu0 %v338
    %v442 = vpop.f32.mrb[0].mxu0
    %v443 = vadd.f32 %v359, %v442
    %v444 = vpop.f32.mrb[0].mxu0
    %v445 = vpop.f32.mrb[0].mxu0
    %v446 = vpop.f32.mrb[0].mxu0
    %447 = vdwg.mxu0
    %448 = vst [vmem:[%s4] sm:$0xff] %v443
    // Predicated region
    $region30: #{a3c_forward.1} parent=1 // pred_check
      _
    $region31: #{a3c_forward.1} parent=1 // pred_check_branch
      %450 = sbr.rel (0) target = $region33
    $region32: #{a3c_forward.1} parent=1 // pred_region
      _
    $region33: #{a3c_forward.1} parent=1 // pred_fallthru
      _
    // Predicated region
    $region34: #{a3c_forward.1} parent=1 // pred_check
      _
    $region35: #{a3c_forward.1} parent=1 // pred_check_branch
      %452 = sbr.rel (0) target = $region37
    $region36: #{a3c_forward.1} parent=1 // pred_region
      _
    $region37: #{a3c_forward.1} parent=1 // pred_fallthru
      _
    %453 = vsyncpa [#allocation3], 1
    %454 = vsyncpa [#allocation5], 1

</llo_original>
